<compile_context>
chip_gen: v7x
topology: tpu7x:2x2x1
jax: 0.10.0
libtpu: 0.0.40
codegen_flags: <defaults>
</compile_context>

<pallas_src>
import functools

import jax
import jax.numpy as jnp
from jax.experimental import pallas as pl
from jax.experimental.pallas import tpu as pltpu

_LANE = 128


def _sublane_quantum(dtype):
    # f32 -> 8, bf16/f16 -> 16, int8/fp8 -> 32 (sub-32-bit packs along sublanes)
    return {4: 8, 2: 16, 1: 32}.get(jnp.dtype(dtype).itemsize, 8)


def _block_budget():
    """(per-array block bytes, vmem_limit_bytes or None) for this TPU generation."""
    kind = ""
    try:
        kind = jax.devices()[0].device_kind.lower()
    except Exception:
        pass
    if "v6" in kind or "v7" in kind:
        # v6e/v7x: 3 arrays x 2 buffers x 4 MiB = 24 MiB; make the budget explicit.
        return 4 * 1024 * 1024, 30 * 1024 * 1024
    # v5e / unknown: 3 arrays x 2 buffers x 2 MiB = 12 MiB of the 16 MiB default.
    return 2 * 1024 * 1024, None


def _choose_width(n, sub):
    """Widest lane-dense width W (multiple of 128) dividing n, preferring widths
    that keep rows = n // W a multiple of the sublane quantum (full vregs)."""
    widths = (4096, 2048, 1024, 512, 256, 128)
    divisors = [w for w in widths if n % w == 0]
    if not divisors:
        return None
    for w in divisors:                       # widest with sublane-aligned rows
        if (n // w) % sub == 0:
            return w
    for w in reversed(divisors):             # narrowest with rows >= sub
        if (n // w) >= sub:
            return w
    return divisors[0]                       # tiny input: anything works


def _pick_tile_rows(rows, width, itemsize, sub, block_bytes):
    """Rows per block: ~block_bytes per array, sublane-aligned, >= 4 grid steps
    for inputs over ~1 MiB, snapped to a divisor of rows when one is nearby."""
    row_bytes = width * itemsize
    target = max(sub, (block_bytes // row_bytes) // sub * sub)
    if rows * row_bytes > (1 << 20):         # guarantee pipeline / megacore use
        target = min(target, max(sub, (rows // 4) // sub * sub))
    if rows <= target:
        return rows                          # single full-extent block (legal)
    lo = max(sub, target - 8 * sub)
    for cand in range(target, lo - 1, -sub):             # full last block
        if rows % cand == 0:
            return cand
    for cand in range(target + sub, target + 8 * sub + 1, sub):
        if cand < rows and rows % cand == 0:
            return cand
    return target                            # partial (masked) last block


def _div_kernel(x_ref, y_ref, o_ref):
    dt = o_ref.dtype
    o_ref[...] = x_ref[...].astype(dt) / y_ref[...].astype(dt)


def _div_scalar_kernel(s_ref, x_ref, o_ref, *, scalar_is_denominator):
    dt = o_ref.dtype
    x = x_ref[...].astype(dt)
    s = s_ref[0, 0].astype(dt)
    o_ref[...] = (x / s) if scalar_is_denominator else (s / x)


def _compiler_params(vmem_limit):
    if vmem_limit is None:
        return pltpu.CompilerParams(dimension_semantics=("parallel",))
    return pltpu.CompilerParams(dimension_semantics=("parallel",),
                                vmem_limit_bytes=vmem_limit)


def _launch_elementwise(x2, y2, out_dtype, sub):
    rows, width = x2.shape
    block_bytes, vmem_limit = _block_budget()
    itemsize = max(jnp.dtype(x2.dtype).itemsize,
                   jnp.dtype(y2.dtype).itemsize,
                   jnp.dtype(out_dtype).itemsize)
    tile_rows = _pick_tile_rows(rows, width, itemsize, sub, block_bytes)
    grid = (pl.cdiv(rows, tile_rows),)
    return pl.pallas_call(
        _div_kernel,
        out_shape=jax.ShapeDtypeStruct((rows, width), out_dtype),
        grid_spec=pltpu.PrefetchScalarGridSpec(
            num_scalar_prefetch=0,
            grid=grid,
            in_specs=[
                pl.BlockSpec((tile_rows, width), lambda i: (i, 0)),
                pl.BlockSpec((tile_rows, width), lambda i: (i, 0)),
            ],
            out_specs=pl.BlockSpec((tile_rows, width), lambda i: (i, 0)),
        ),
        compiler_params=_compiler_params(vmem_limit),
    )(x2, y2)


def _launch_scalar(x2, scalar, out_dtype, sub, scalar_is_denominator):
    rows, width = x2.shape
    block_bytes, vmem_limit = _block_budget()
    itemsize = max(jnp.dtype(x2.dtype).itemsize, jnp.dtype(out_dtype).itemsize)
    tile_rows = _pick_tile_rows(rows, width, itemsize, sub, block_bytes)
    grid = (pl.cdiv(rows, tile_rows),)
    # The size-1 operand rides in SMEM (32-bit scalar); no full-size broadcast
    # of the small operand is ever materialized in HBM.
    s11 = jnp.asarray(scalar, dtype=jnp.float32).reshape(1, 1)
    return pl.pallas_call(
        functools.partial(_div_scalar_kernel,
                          scalar_is_denominator=scalar_is_denominator),
        out_shape=jax.ShapeDtypeStruct((rows, width), out_dtype),
        grid_spec=pltpu.PrefetchScalarGridSpec(
            num_scalar_prefetch=0,
            grid=grid,
            in_specs=[
                pl.BlockSpec(memory_space=pltpu.MemorySpace.SMEM),
                pl.BlockSpec((tile_rows, width), lambda i: (i, 0)),
            ],
            out_specs=pl.BlockSpec((tile_rows, width), lambda i: (i, 0)),
        ),
        compiler_params=_compiler_params(vmem_limit),
    )(s11, x2)


def _flat_div(xf, yf, out_dtype):
    """Same-length flat vectors, elementwise divide via Pallas."""
    n = xf.size
    sub = max(_sublane_quantum(xf.dtype), _sublane_quantum(yf.dtype),
              _sublane_quantum(out_dtype))
    width = _choose_width(n, sub)
    if width is not None:
        rows = n // width
        out2 = _launch_elementwise(xf.reshape(rows, width),
                                   yf.reshape(rows, width), out_dtype, sub)
        return out2.reshape(n)
    # Cold path: flat size not a multiple of 128.  Stream the 128-aligned bulk
    # through the kernel; finish the < 128-element tail with one tiny XLA op.
    # TODO(synk): fold the tail into the kernel with an in-kernel mask
    # (scalar-prefetched valid count) to remove the slice/concat passes.
    n_main = (n // _LANE) * _LANE
    if n_main == 0:
        return xf.astype(out_dtype) / yf.astype(out_dtype)
    main = _flat_div(xf[:n_main], yf[:n_main], out_dtype)
    tail = xf[n_main:].astype(out_dtype) / yf[n_main:].astype(out_dtype)
    return jnp.concatenate([main, tail.astype(out_dtype)])


def _flat_div_scalar(tf, scalar, out_dtype, scalar_is_denominator):
    """Flat tensor op scalar (scalar either denominator or numerator)."""
    n = tf.size
    sub = max(_sublane_quantum(tf.dtype), _sublane_quantum(out_dtype))
    width = _choose_width(n, sub)
    if width is not None:
        rows = n // width
        out2 = _launch_scalar(tf.reshape(rows, width), scalar, out_dtype, sub,
                              scalar_is_denominator)
        return out2.reshape(n)
    n_main = (n // _LANE) * _LANE
    s = jnp.asarray(scalar).astype(out_dtype)
    if n_main == 0:
        t = tf.astype(out_dtype)
        return (t / s) if scalar_is_denominator else (s / t)
    main = _flat_div_scalar(tf[:n_main], scalar, out_dtype, scalar_is_denominator)
    t_tail = tf[n_main:].astype(out_dtype)
    tail = (t_tail / s) if scalar_is_denominator else (s / t_tail)
    return jnp.concatenate([main, tail.astype(out_dtype)])


def pallas_div(x, y):
    """Elementwise x / y with NumPy broadcasting; hot paths run in Pallas."""
    x = jnp.asarray(x)
    y = jnp.asarray(y)
    out_shape = jnp.broadcast_shapes(x.shape, y.shape)
    out_dtype = jnp.result_type(x.dtype, y.dtype)
    if not jnp.issubdtype(out_dtype, jnp.inexact):
        out_dtype = jnp.float32  # torch-style true division of integer inputs

    n = 1
    for d in out_shape:
        n *= d
    if n == 0:
        return jnp.zeros(out_shape, out_dtype)

    # Size-1 operand: keep it in SMEM, broadcast in-kernel (no HBM broadcast).
    if y.size == 1 and x.size == n:
        return _flat_div_scalar(x.reshape(-1), y.reshape(()), out_dtype,
                                True).reshape(out_shape)
    if x.size == 1 and y.size == n:
        return _flat_div_scalar(y.reshape(-1), x.reshape(()), out_dtype,
                                False).reshape(out_shape)

    if x.shape == y.shape:
        # Native dtypes go straight in; any promotion happens inside the kernel.
        return _flat_div(x.reshape(-1), y.reshape(-1), out_dtype).reshape(out_shape)

    # General partial broadcasting (rare): fall back to materialized broadcasts.
    # TODO(synk): stream per-channel-style divisors untiled instead of
    # broadcasting them to full size in HBM.
    xb = jnp.broadcast_to(x, out_shape)
    yb = jnp.broadcast_to(y, out_shape)
    return _flat_div(xb.reshape(-1), yb.reshape(-1), out_dtype).reshape(out_shape)


if __name__ == "__main__":
    key = jax.random.PRNGKey(0)
    kx, ky = jax.random.split(key)
    shape = (2, 4, 16, 16)  # small NCHW, consistent with the module
    x = jax.random.normal(kx, shape, dtype=jnp.float32)
    # Keep divisor away from zero for numerical sanity.
    y = jax.random.uniform(ky, shape, dtype=jnp.float32, minval=0.5, maxval=2.0)

    out = pallas_div(x, y)
    jax.block_until_ready(out)

    ref = x / y
    assert out.shape == ref.shape and out.dtype == ref.dtype
    assert jnp.allclose(out, ref, rtol=1e-6, atol=1e-6), "mismatch vs reference"
    print("KERNEL_OK")
</pallas_src>

<mosaic_0001>
module attributes {stable_mosaic.version = 11 : i64} {
  func.func @_div_kernel(%arg0: i32, %arg1: memref<8x256xf32, #tpu.memory_space<vmem>>, %arg2: memref<8x256xf32, #tpu.memory_space<vmem>>, %arg3: memref<8x256xf32, #tpu.memory_space<vmem>>) attributes {dimension_semantics = [#tpu.dimension_semantics<parallel>], iteration_bounds = array<i64: 1>, scalar_prefetch = 0 : i64, scratch_operands = 0 : i64, tpu.core_type = #tpu.core_type<tc>, window_params = [{transform_indices = @transform_0, window_bounds = array<i64: 8, 256>}, {transform_indices = @transform_1, window_bounds = array<i64: 8, 256>}, {transform_indices = @transform_2, window_bounds = array<i64: 8, 256>}]} {
    %c0 = arith.constant 0 : index
    %c0_0 = arith.constant 0 : index
    %0 = vector.load %arg1[%c0, %c0_0] : memref<8x256xf32, #tpu.memory_space<vmem>>, vector<8x256xf32>
    %c0_1 = arith.constant 0 : index
    %c0_2 = arith.constant 0 : index
    %1 = vector.load %arg2[%c0_1, %c0_2] : memref<8x256xf32, #tpu.memory_space<vmem>>, vector<8x256xf32>
    %2 = arith.divf %0, %1 : vector<8x256xf32>
    %c0_3 = arith.constant 0 : index
    %c0_4 = arith.constant 0 : index
    %3 = vector.load %arg3[%c0_3, %c0_4] : memref<8x256xf32, #tpu.memory_space<vmem>>, vector<8x256xf32>
    tpu.vector_store %arg3[%c0_3, %c0_4], %2 {strides = array<i32>} : memref<8x256xf32, #tpu.memory_space<vmem>>, vector<8x256xf32>,
    return
  }
  func.func @transform_0(%arg0: i32) -> (i32, i32) {
    %c0_i32 = arith.constant 0 : i32
    %c0_i32_0 = arith.constant 0 : i32
    return %arg0, %c0_i32 : i32, i32
  }
  func.func @transform_1(%arg0: i32) -> (i32, i32) {
    %c0_i32 = arith.constant 0 : i32
    %c0_i32_0 = arith.constant 0 : i32
    return %arg0, %c0_i32 : i32, i32
  }
  func.func @transform_2(%arg0: i32) -> (i32, i32) {
    %c0_i32 = arith.constant 0 : i32
    %c0_i32_0 = arith.constant 0 : i32
    return %arg0, %c0_i32 : i32, i32
  }
}

</mosaic_0001>

<llo_original>
// kernel: tpu_custom_call.1
$region0: #{tpu_custom_call.1}
  #allocation0 [shape = 'u32[]', space=smem, size = 0x4, offset = 0x4, fixed_abs, tag = 'smem constant byte address 0x4 - core index']
  #allocation1 [shape = 'u32[144,128]{1,0:T(1,128)}', space=vmem, size = 0x12000, scoped, tag = 'internal scratch']
  %s0 = inlined_call_operand.hbm [shape: f32[8,256], index: 0, kind: input, shape index: {}]
  %s1 = inlined_call_operand.hbm [shape: f32[8,256], index: 1, kind: input, shape index: {}]
  %s2 = inlined_call_operand.hbm [shape: f32[8,256], index: 2, kind: output, shape index: {}]
  %s3 = sld [smem:[#allocation0]]
  $region26: #{tpu_custom_call.1} parent=0
    _
  %s5 = ssub.s32 1, %s3
  %s6 = scalar_select 0, %s5, %s3
  $region1: #{tpu_custom_call.1} parent=0
    #allocation2 [shape = 'u8[8192]{0}', space=vmem, size = 0x2000, scoped, tag = 'input window, operand 0, single buffered']
    #allocation3 [shape = 's32[1]{0}', space=sflag, size = 0x4, scoped, tag = 'scoped memory for tpu_custom_call.1']
    #allocation4 [shape = 's32[1]{0}', space=sflag, size = 0x4, scoped, tag = 'scoped memory for tpu_custom_call.1']
    #allocation5 [shape = 'u8[8192]{0}', space=vmem, size = 0x2000, scoped, tag = 'input window, operand 1, single buffered']
    #allocation6 [shape = 's32[1]{0}', space=sflag, size = 0x4, scoped, tag = 'scoped memory for tpu_custom_call.1']
    #allocation7 [shape = 'u8[8192]{0}', space=vmem, size = 0x2000, scoped, tag = 'output window, operand 0, single buffered']
    %7 = vsyncpa [#allocation3], 0
    %8 = vsyncpa [#allocation6], 0
    %9 = vsyncpa [#allocation4], 0
    // Predicated region
    $region2: #{tpu_custom_call.1} parent=1 // pred_check
      _
    $region3: #{tpu_custom_call.1} parent=1 // pred_check_branch
      %11 = sbr.rel (0) target = $region5
    $region4: #{tpu_custom_call.1} parent=1 // pred_region
      %s13 = ssub.s32 256, 256
      %14 = vsyncadd [#allocation3], %s13
      %s16 = sshll.u32 [#allocation2], 4
      %s17 = int_to_ptr.vmem [resolvable:$true] %s16
      %19 = dma.hbm_to_vmem [thread:$0]  %s0, 256, %s17, [#allocation3]
    $region5: #{tpu_custom_call.1} parent=1 // pred_fallthru
      _
    // Predicated region
    $region6: #{tpu_custom_call.1} parent=1 // pred_check
      _
    $region7: #{tpu_custom_call.1} parent=1 // pred_check_branch
      %21 = sbr.rel (0) target = $region9
    $region8: #{tpu_custom_call.1} parent=1 // pred_region
      %s23 = ssub.s32 256, 256
      %24 = vsyncadd [#allocation6], %s23
      %s26 = sshll.u32 [#allocation5], 4
      %s27 = int_to_ptr.vmem [resolvable:$true] %s26
      %29 = dma.hbm_to_vmem [thread:$0]  %s1, 256, %s27, [#allocation6]
    $region9: #{tpu_custom_call.1} parent=1 // pred_fallthru
      _
    // Predicated region
    $region10: #{tpu_custom_call.1} parent=1 // pred_check
      _
    $region11: #{tpu_custom_call.1} parent=1 // pred_check_branch
      %31 = sbr.rel (0) target = $region13
    $region12: #{tpu_custom_call.1} parent=1 // pred_region
      %32 = dma.done [#allocation3], 256
    $region13: #{tpu_custom_call.1} parent=1 // pred_fallthru
      _
    // Predicated region
    $region14: #{tpu_custom_call.1} parent=1 // pred_check
      _
    $region15: #{tpu_custom_call.1} parent=1 // pred_check_branch
      %34 = sbr.rel (0) target = $region17
    $region16: #{tpu_custom_call.1} parent=1 // pred_region
      %35 = dma.done [#allocation6], 256
    $region17: #{tpu_custom_call.1} parent=1 // pred_fallthru
      _
    %v36 = vld [vmem:[#allocation2] sm:$0xff]
    %v37 = vld [vmem:[#allocation2 + $0x8] sm:$0xff]
    %v38 = vld [vmem:[#allocation5] sm:$0xff]
    %v39 = vld [vmem:[#allocation5 + $0x8] sm:$0xff]
    %v40 = vrcp.pop %v38
    %v41 = vmul.f32 %v36, %v40
    %v42 = vrcp.pop %v39
    %v43 = vmul.f32 %v37, %v42
    %44 = vst [vmem:[#allocation7] sm:$0xff] %v41
    %45 = vst [vmem:[#allocation7 + $0x8] sm:$0xff] %v43
    // Predicated region
    $region18: #{tpu_custom_call.1} parent=1 // pred_check
      _
    $region19: #{tpu_custom_call.1} parent=1 // pred_check_branch
      %47 = sbr.rel (0) target = $region21
    $region20: #{tpu_custom_call.1} parent=1 // pred_region
      %s49 = ssub.s32 256, 256
      %50 = vsyncadd [#allocation4], %s49
      %s52 = sshll.u32 [#allocation7], 4
      %s53 = int_to_ptr.vmem [resolvable:$true] %s52
      %55 = dma.vmem_to_hbm [thread:$0]  %s53, 256, %s2, [#allocation4]
    $region21: #{tpu_custom_call.1} parent=1 // pred_fallthru
      _
    // Predicated region
    $region22: #{tpu_custom_call.1} parent=1 // pred_check
      _
    $region23: #{tpu_custom_call.1} parent=1 // pred_check_branch
      %57 = sbr.rel (0) target = $region25
    $region24: #{tpu_custom_call.1} parent=1 // pred_region
      %58 = dma.done [#allocation4], 256
    $region25: #{tpu_custom_call.1} parent=1 // pred_fallthru
      _
    %59 = vsyncpa [#allocation3], 1
    %60 = vsyncpa [#allocation6], 1
    %61 = vsyncpa [#allocation4], 1

</llo_original>
